<compile_context>
chip_gen: v7x
topology: tpu7x:2x2x1
jax: 0.10.0
libtpu: 0.0.40
codegen_flags: <defaults>
</compile_context>

<pallas_src>
import jax
import jax.numpy as jnp
from jax.experimental import pallas as pl
from jax.experimental.pallas import tpu as pltpu

# ----- "args" from the original module, fixed deterministically -------------
GNN_LAYERS = 2                      # args.gnn_layer
GCN_MODE = "batch"                  # args.gcn_mode -> LightGCNLayer (emb' = adj @ emb)
NUM_SUBSEQ_ID = 8                   # args.num_subseq_id  (Ns)
NUM_TARGET = 8                      # Nt
EMB_DIM = 32                        # D
N_NODES = NUM_SUBSEQ_ID + NUM_TARGET            # 16
GRAPHS_PER_BLOCK = 128 // EMB_DIM               # 4 graphs packed -> 128 lanes
LANES = GRAPHS_PER_BLOCK * EMB_DIM              # 128


def _gcn_kernel(adj_ref, sub_ref, tgt_ref, sub_out_ref, tgt_out_ref):
    """LightGCN propagation for GRAPHS_PER_BLOCK lane-packed graphs.

    adj_ref     : [GPB, N, N]  f32   normalized adjacency per graph
    sub_ref     : [Ns, GPB*D]  f32   subseq embeddings, graphs packed along lanes
    tgt_ref     : [Nt, GPB*D]  f32   target embeddings, graphs packed along lanes
    sub_out_ref : [Ns, GPB*D]  f32   mean of layer-0..L embeddings (subseq rows)
    tgt_out_ref : [Nt, GPB*D]  f32   mean of layer-0..L embeddings (target rows)
    """
    accs = []
    # Static Python loops: GRAPHS_PER_BLOCK and GNN_LAYERS are tiny compile-time consts.
    for j in range(GRAPHS_PER_BLOCK):
        lo, hi = j * EMB_DIM, (j + 1) * EMB_DIM
        # Re-assemble this graph's [N, D] node embeddings (concat along node axis).
        cur = jnp.concatenate([sub_ref[:, lo:hi], tgt_ref[:, lo:hi]], axis=0)
        adj_j = adj_ref[j]                                           # [N, N]
        acc = cur
        for _ in range(GNN_LAYERS):
            cur = jnp.dot(adj_j, cur, preferred_element_type=jnp.float32)  # MXU
            acc = acc + cur
        accs.append(acc)
    # One lane-dense [N, 128] result; scale once (not per layer), then split rows.
    packed = jnp.concatenate(accs, axis=-1) * (1.0 / (GNN_LAYERS + 1))
    sub_out_ref[...] = packed[:NUM_SUBSEQ_ID]
    tgt_out_ref[...] = packed[NUM_SUBSEQ_ID:]


def _lane_pack(x, nb, gpb):
    """[nb*gpb, R, D] -> [nb, R, gpb*D] (graphs packed along the lane axis)."""
    _, r, d = x.shape
    return x.reshape(nb, gpb, r, d).transpose(0, 2, 1, 3).reshape(nb, r, gpb * d)


def _lane_unpack(x, b, gpb):
    """[nb, R, gpb*D] -> [b, R, D]."""
    nb, r, ld = x.shape
    d = ld // gpb
    return x.reshape(nb, r, gpb, d).transpose(0, 2, 1, 3).reshape(nb * gpb, r, d)[:b]


def gcn_forward(adj, subseq_emb, target_emb):
    """JAX wrapper mirroring GCN.forward, batched over graphs.

    Batched call:
        adj        : [B, N, N]  f32
        subseq_emb : [B, Ns, D] f32
        target_emb : [B, Nt, D] f32
        returns ([B, Ns, D], [B, Nt, D])
    Single-graph call (original module signature): 2-D/2-D/2-D in, 2-D/2-D out.
    """
    single = adj.ndim == 2
    if single:
        adj = adj[None]
        subseq_emb = subseq_emb[None]
        target_emb = target_emb[None]

    b = adj.shape[0]
    ns, nt, d, n, gpb = NUM_SUBSEQ_ID, NUM_TARGET, EMB_DIM, N_NODES, GRAPHS_PER_BLOCK

    # Pad the batch to a multiple of GRAPHS_PER_BLOCK with zero graphs.
    nb = -(-b // gpb)
    pad = nb * gpb - b
    if pad:
        adj = jnp.pad(adj, ((0, pad), (0, 0), (0, 0)))
        subseq_emb = jnp.pad(subseq_emb, ((0, pad), (0, 0), (0, 0)))
        target_emb = jnp.pad(target_emb, ((0, pad), (0, 0), (0, 0)))

    adj_packed = adj.reshape(nb, gpb, n, n)                 # [NB, GPB, N, N]
    sub_packed = _lane_pack(subseq_emb, nb, gpb)            # [NB, Ns, 128]
    tgt_packed = _lane_pack(target_emb, nb, gpb)            # [NB, Nt, 128]

    sub_out_p, tgt_out_p = pl.pallas_call(
        _gcn_kernel,
        out_shape=(
            jax.ShapeDtypeStruct((nb, ns, gpb * d), jnp.float32),
            jax.ShapeDtypeStruct((nb, nt, gpb * d), jnp.float32),
        ),
        grid_spec=pltpu.PrefetchScalarGridSpec(
            num_scalar_prefetch=0,
            grid=(nb,),                                     # one block of graphs / step
            in_specs=[
                pl.BlockSpec((None, gpb, n, n), lambda i: (i, 0, 0, 0)),
                pl.BlockSpec((None, ns, gpb * d), lambda i: (i, 0, 0)),
                pl.BlockSpec((None, nt, gpb * d), lambda i: (i, 0, 0)),
            ],
            out_specs=[
                pl.BlockSpec((None, ns, gpb * d), lambda i: (i, 0, 0)),
                pl.BlockSpec((None, nt, gpb * d), lambda i: (i, 0, 0)),
            ],
        ),
        compiler_params=pltpu.CompilerParams(
            dimension_semantics=("parallel",)),             # megacore on v7x; free elsewhere
    )(adj_packed, sub_packed, tgt_packed)

    sub_out = _lane_unpack(sub_out_p, b, gpb)               # [B, Ns, D]
    tgt_out = _lane_unpack(tgt_out_p, b, gpb)               # [B, Nt, D]
    if single:
        return sub_out[0], tgt_out[0]
    return sub_out, tgt_out


def _reference(adj, subseq_emb, target_emb):
    """Pure-JAX reference of the PyTorch forward, vmapped over the graph batch."""
    def one(adj_g, sub_g, tgt_g):
        emb = jnp.concatenate([sub_g, tgt_g], axis=0)
        layers = [emb]
        for _ in range(GNN_LAYERS):
            layers.append(adj_g @ layers[-1])
        s = sum(layers) / len(layers)
        return s[:NUM_SUBSEQ_ID], s[NUM_SUBSEQ_ID:]
    return jax.vmap(one)(adj, subseq_emb, target_emb)


def _make_normalized_adj(key, n):
    """Dense symmetric D^(-1/2) A D^(-1/2) adjacency with self loops."""
    a = (jax.random.uniform(key, (n, n)) > 0.7).astype(jnp.float32)
    a = jnp.maximum(a, a.T)
    a = a + jnp.eye(n, dtype=jnp.float32)
    deg = jnp.sum(a, axis=1)
    d_inv_sqrt = 1.0 / jnp.sqrt(deg)
    return a * d_inv_sqrt[:, None] * d_inv_sqrt[None, :]


if __name__ == "__main__":
    key = jax.random.PRNGKey(0)
    k_adj, k_sub, k_tgt = jax.random.split(key, 3)

    B = 8                                                   # batch of graphs (2 grid steps)
    adj_keys = jax.random.split(k_adj, B)
    adj = jnp.stack([_make_normalized_adj(k, N_NODES) for k in adj_keys])   # [8, 16, 16]
    subseq_emb = jax.random.normal(k_sub, (B, NUM_SUBSEQ_ID, EMB_DIM),
                                   dtype=jnp.float32)                        # [8, 8, 32]
    target_emb = jax.random.normal(k_tgt, (B, NUM_TARGET, EMB_DIM),
                                   dtype=jnp.float32)                        # [8, 8, 32]

    # Batched path (primary).
    sub_out, tgt_out = gcn_forward(adj, subseq_emb, target_emb)
    jax.block_until_ready(sub_out)
    jax.block_until_ready(tgt_out)

    ref_sub, ref_tgt = _reference(adj, subseq_emb, target_emb)
    assert sub_out.shape == (B, NUM_SUBSEQ_ID, EMB_DIM)
    assert tgt_out.shape == (B, NUM_TARGET, EMB_DIM)
    assert jnp.allclose(sub_out, ref_sub, atol=1e-5, rtol=1e-5)
    assert jnp.allclose(tgt_out, ref_tgt, atol=1e-5, rtol=1e-5)

    # Single-graph path (original module signature), pads to one lane-packed block.
    s1, t1 = gcn_forward(adj[0], subseq_emb[0], target_emb[0])
    jax.block_until_ready(s1)
    jax.block_until_ready(t1)
    assert s1.shape == (NUM_SUBSEQ_ID, EMB_DIM)
    assert t1.shape == (NUM_TARGET, EMB_DIM)
    assert jnp.allclose(s1, ref_sub[0], atol=1e-5, rtol=1e-5)
    assert jnp.allclose(t1, ref_tgt[0], atol=1e-5, rtol=1e-5)

    print("KERNEL_OK")
</pallas_src>

<mosaic_0001>
module attributes {stable_mosaic.version = 11 : i64} {
  func.func @_gcn_kernel(%arg0: i32, %arg1: memref<1x4x16x16xf32, #tpu.memory_space<vmem>>, %arg2: memref<1x8x128xf32, #tpu.memory_space<vmem>>, %arg3: memref<1x8x128xf32, #tpu.memory_space<vmem>>, %arg4: memref<1x8x128xf32, #tpu.memory_space<vmem>>, %arg5: memref<1x8x128xf32, #tpu.memory_space<vmem>>) attributes {dimension_semantics = [#tpu.dimension_semantics<parallel>], iteration_bounds = array<i64: 2>, scalar_prefetch = 0 : i64, scratch_operands = 0 : i64, tpu.core_type = #tpu.core_type<tc>, window_params = [{transform_indices = @transform_0, window_bounds = array<i64: 1, 4, 16, 16>}, {transform_indices = @transform_1, window_bounds = array<i64: 1, 8, 128>}, {transform_indices = @transform_2, window_bounds = array<i64: 1, 8, 128>}, {transform_indices = @transform_3, window_bounds = array<i64: 1, 8, 128>}, {transform_indices = @transform_4, window_bounds = array<i64: 1, 8, 128>}]} {
    %c0 = arith.constant 0 : index
    %c0_0 = arith.constant 0 : index
    %c0_1 = arith.constant 0 : index
    %0 = vector.load %arg2[%c0, %c0_0, %c0_1] : memref<1x8x128xf32, #tpu.memory_space<vmem>>, vector<1x8x32xf32>
    %1 = vector.shape_cast %0 : vector<1x8x32xf32> to vector<8x32xf32>
    %c0_2 = arith.constant 0 : index
    %c0_3 = arith.constant 0 : index
    %c0_4 = arith.constant 0 : index
    %2 = vector.load %arg3[%c0_2, %c0_3, %c0_4] : memref<1x8x128xf32, #tpu.memory_space<vmem>>, vector<1x8x32xf32>
    %3 = vector.shape_cast %2 : vector<1x8x32xf32> to vector<8x32xf32>
    %4 = tpu.concatenate %1, %3 in 0 : vector<8x32xf32>, vector<8x32xf32> -> vector<16x32xf32>
    %c0_5 = arith.constant 0 : index
    %c0_6 = arith.constant 0 : index
    %c0_7 = arith.constant 0 : index
    %c0_8 = arith.constant 0 : index
    %5 = vector.load %arg1[%c0_5, %c0_6, %c0_7, %c0_8] : memref<1x4x16x16xf32, #tpu.memory_space<vmem>>, vector<1x1x16x16xf32>
    %6 = vector.shape_cast %5 : vector<1x1x16x16xf32> to vector<16x16xf32>
    %cst = arith.constant dense<0.000000e+00> : vector<16x32xf32>
    %7 = tpu.matmul %6, %4, %cst {dimension_numbers = #tpu.dot_dimension_numbers<[1], [0], [0], [1], [0, 0, 1, 1], [], []>} : vector<16x16xf32>, vector<16x32xf32>, vector<16x32xf32> -> vector<16x32xf32>
    %8 = arith.addf %4, %7 : vector<16x32xf32>
    %cst_9 = arith.constant dense<0.000000e+00> : vector<16x32xf32>
    %9 = tpu.matmul %6, %7, %cst_9 {dimension_numbers = #tpu.dot_dimension_numbers<[1], [0], [0], [1], [0, 0, 1, 1], [], []>} : vector<16x16xf32>, vector<16x32xf32>, vector<16x32xf32> -> vector<16x32xf32>
    %10 = arith.addf %8, %9 : vector<16x32xf32>
    %c0_10 = arith.constant 0 : index
    %c0_11 = arith.constant 0 : index
    %c32 = arith.constant 32 : index
    %11 = vector.load %arg2[%c0_10, %c0_11, %c32] : memref<1x8x128xf32, #tpu.memory_space<vmem>>, vector<1x8x32xf32>
    %12 = vector.shape_cast %11 : vector<1x8x32xf32> to vector<8x32xf32>
    %c0_12 = arith.constant 0 : index
    %c0_13 = arith.constant 0 : index
    %c32_14 = arith.constant 32 : index
    %13 = vector.load %arg3[%c0_12, %c0_13, %c32_14] : memref<1x8x128xf32, #tpu.memory_space<vmem>>, vector<1x8x32xf32>
    %14 = vector.shape_cast %13 : vector<1x8x32xf32> to vector<8x32xf32>
    %15 = tpu.concatenate %12, %14 in 0 : vector<8x32xf32>, vector<8x32xf32> -> vector<16x32xf32>
    %c0_15 = arith.constant 0 : index
    %c1 = arith.constant 1 : index
    %c0_16 = arith.constant 0 : index
    %c0_17 = arith.constant 0 : index
    %16 = vector.load %arg1[%c0_15, %c1, %c0_16, %c0_17] : memref<1x4x16x16xf32, #tpu.memory_space<vmem>>, vector<1x1x16x16xf32>
    %17 = vector.shape_cast %16 : vector<1x1x16x16xf32> to vector<16x16xf32>
    %cst_18 = arith.constant dense<0.000000e+00> : vector<16x32xf32>
    %18 = tpu.matmul %17, %15, %cst_18 {dimension_numbers = #tpu.dot_dimension_numbers<[1], [0], [0], [1], [0, 0, 1, 1], [], []>} : vector<16x16xf32>, vector<16x32xf32>, vector<16x32xf32> -> vector<16x32xf32>
    %19 = arith.addf %15, %18 : vector<16x32xf32>
    %cst_19 = arith.constant dense<0.000000e+00> : vector<16x32xf32>
    %20 = tpu.matmul %17, %18, %cst_19 {dimension_numbers = #tpu.dot_dimension_numbers<[1], [0], [0], [1], [0, 0, 1, 1], [], []>} : vector<16x16xf32>, vector<16x32xf32>, vector<16x32xf32> -> vector<16x32xf32>
    %21 = arith.addf %19, %20 : vector<16x32xf32>
    %c0_20 = arith.constant 0 : index
    %c0_21 = arith.constant 0 : index
    %c64 = arith.constant 64 : index
    %22 = vector.load %arg2[%c0_20, %c0_21, %c64] : memref<1x8x128xf32, #tpu.memory_space<vmem>>, vector<1x8x32xf32>
    %23 = vector.shape_cast %22 : vector<1x8x32xf32> to vector<8x32xf32>
    %c0_22 = arith.constant 0 : index
    %c0_23 = arith.constant 0 : index
    %c64_24 = arith.constant 64 : index
    %24 = vector.load %arg3[%c0_22, %c0_23, %c64_24] : memref<1x8x128xf32, #tpu.memory_space<vmem>>, vector<1x8x32xf32>
    %25 = vector.shape_cast %24 : vector<1x8x32xf32> to vector<8x32xf32>
    %26 = tpu.concatenate %23, %25 in 0 : vector<8x32xf32>, vector<8x32xf32> -> vector<16x32xf32>
    %c0_25 = arith.constant 0 : index
    %c2 = arith.constant 2 : index
    %c0_26 = arith.constant 0 : index
    %c0_27 = arith.constant 0 : index
    %27 = vector.load %arg1[%c0_25, %c2, %c0_26, %c0_27] : memref<1x4x16x16xf32, #tpu.memory_space<vmem>>, vector<1x1x16x16xf32>
    %28 = vector.shape_cast %27 : vector<1x1x16x16xf32> to vector<16x16xf32>
    %cst_28 = arith.constant dense<0.000000e+00> : vector<16x32xf32>
    %29 = tpu.matmul %28, %26, %cst_28 {dimension_numbers = #tpu.dot_dimension_numbers<[1], [0], [0], [1], [0, 0, 1, 1], [], []>} : vector<16x16xf32>, vector<16x32xf32>, vector<16x32xf32> -> vector<16x32xf32>
    %30 = arith.addf %26, %29 : vector<16x32xf32>
    %cst_29 = arith.constant dense<0.000000e+00> : vector<16x32xf32>
    %31 = tpu.matmul %28, %29, %cst_29 {dimension_numbers = #tpu.dot_dimension_numbers<[1], [0], [0], [1], [0, 0, 1, 1], [], []>} : vector<16x16xf32>, vector<16x32xf32>, vector<16x32xf32> -> vector<16x32xf32>
    %32 = arith.addf %30, %31 : vector<16x32xf32>
    %c0_30 = arith.constant 0 : index
    %c0_31 = arith.constant 0 : index
    %c96 = arith.constant 96 : index
    %33 = vector.load %arg2[%c0_30, %c0_31, %c96] : memref<1x8x128xf32, #tpu.memory_space<vmem>>, vector<1x8x32xf32>
    %34 = vector.shape_cast %33 : vector<1x8x32xf32> to vector<8x32xf32>
    %c0_32 = arith.constant 0 : index
    %c0_33 = arith.constant 0 : index
    %c96_34 = arith.constant 96 : index
    %35 = vector.load %arg3[%c0_32, %c0_33, %c96_34] : memref<1x8x128xf32, #tpu.memory_space<vmem>>, vector<1x8x32xf32>
    %36 = vector.shape_cast %35 : vector<1x8x32xf32> to vector<8x32xf32>
    %37 = tpu.concatenate %34, %36 in 0 : vector<8x32xf32>, vector<8x32xf32> -> vector<16x32xf32>
    %c0_35 = arith.constant 0 : index
    %c3 = arith.constant 3 : index
    %c0_36 = arith.constant 0 : index
    %c0_37 = arith.constant 0 : index
    %38 = vector.load %arg1[%c0_35, %c3, %c0_36, %c0_37] : memref<1x4x16x16xf32, #tpu.memory_space<vmem>>, vector<1x1x16x16xf32>
    %39 = vector.shape_cast %38 : vector<1x1x16x16xf32> to vector<16x16xf32>
    %cst_38 = arith.constant dense<0.000000e+00> : vector<16x32xf32>
    %40 = tpu.matmul %39, %37, %cst_38 {dimension_numbers = #tpu.dot_dimension_numbers<[1], [0], [0], [1], [0, 0, 1, 1], [], []>} : vector<16x16xf32>, vector<16x32xf32>, vector<16x32xf32> -> vector<16x32xf32>
    %41 = arith.addf %37, %40 : vector<16x32xf32>
    %cst_39 = arith.constant dense<0.000000e+00> : vector<16x32xf32>
    %42 = tpu.matmul %39, %40, %cst_39 {dimension_numbers = #tpu.dot_dimension_numbers<[1], [0], [0], [1], [0, 0, 1, 1], [], []>} : vector<16x16xf32>, vector<16x32xf32>, vector<16x32xf32> -> vector<16x32xf32>
    %43 = arith.addf %41, %42 : vector<16x32xf32>
    %44 = tpu.concatenate %10, %21, %32, %43 in 1 : vector<16x32xf32>, vector<16x32xf32>, vector<16x32xf32>, vector<16x32xf32> -> vector<16x128xf32>
    %cst_40 = arith.constant 0.333333343 : f32
    %45 = vector.broadcast %cst_40 : f32 to vector<16x128xf32>
    %46 = arith.mulf %44, %45 : vector<16x128xf32>
    %47 = vector.extract_strided_slice %46 {offsets = [0, 0], sizes = [8, 128], strides = [1, 1]} : vector<16x128xf32> to vector<8x128xf32>
    %c0_41 = arith.constant 0 : index
    %c0_42 = arith.constant 0 : index
    %c0_43 = arith.constant 0 : index
    %48 = vector.load %arg4[%c0_41, %c0_42, %c0_43] : memref<1x8x128xf32, #tpu.memory_space<vmem>>, vector<1x8x128xf32>
    %49 = vector.shape_cast %48 : vector<1x8x128xf32> to vector<8x128xf32>
    %50 = vector.shape_cast %47 : vector<8x128xf32> to vector<1x8x128xf32>
    tpu.vector_store %arg4[%c0_41, %c0_42, %c0_43], %50 {strides = array<i32>} : memref<1x8x128xf32, #tpu.memory_space<vmem>>, vector<1x8x128xf32>,
    %51 = vector.extract_strided_slice %46 {offsets = [8, 0], sizes = [8, 128], strides = [1, 1]} : vector<16x128xf32> to vector<8x128xf32>
    %c0_44 = arith.constant 0 : index
    %c0_45 = arith.constant 0 : index
    %c0_46 = arith.constant 0 : index
    %52 = vector.load %arg5[%c0_44, %c0_45, %c0_46] : memref<1x8x128xf32, #tpu.memory_space<vmem>>, vector<1x8x128xf32>
    %53 = vector.shape_cast %52 : vector<1x8x128xf32> to vector<8x128xf32>
    %54 = vector.shape_cast %51 : vector<8x128xf32> to vector<1x8x128xf32>
    tpu.vector_store %arg5[%c0_44, %c0_45, %c0_46], %54 {strides = array<i32>} : memref<1x8x128xf32, #tpu.memory_space<vmem>>, vector<1x8x128xf32>,
    return
  }
  func.func @transform_0(%arg0: i32) -> (i32, i32, i32, i32) {
    %c0_i32 = arith.constant 0 : i32
    %c0_i32_0 = arith.constant 0 : i32
    %c0_i32_1 = arith.constant 0 : i32
    %c0_i32_2 = arith.constant 0 : i32
    return %arg0, %c0_i32, %c0_i32_0, %c0_i32_1 : i32, i32, i32, i32
  }
  func.func @transform_1(%arg0: i32) -> (i32, i32, i32) {
    %c0_i32 = arith.constant 0 : i32
    %c0_i32_0 = arith.constant 0 : i32
    %c0_i32_1 = arith.constant 0 : i32
    return %arg0, %c0_i32, %c0_i32_0 : i32, i32, i32
  }
  func.func @transform_2(%arg0: i32) -> (i32, i32, i32) {
    %c0_i32 = arith.constant 0 : i32
    %c0_i32_0 = arith.constant 0 : i32
    %c0_i32_1 = arith.constant 0 : i32
    return %arg0, %c0_i32, %c0_i32_0 : i32, i32, i32
  }
  func.func @transform_3(%arg0: i32) -> (i32, i32, i32) {
    %c0_i32 = arith.constant 0 : i32
    %c0_i32_0 = arith.constant 0 : i32
    %c0_i32_1 = arith.constant 0 : i32
    return %arg0, %c0_i32, %c0_i32_0 : i32, i32, i32
  }
  func.func @transform_4(%arg0: i32) -> (i32, i32, i32) {
    %c0_i32 = arith.constant 0 : i32
    %c0_i32_0 = arith.constant 0 : i32
    %c0_i32_1 = arith.constant 0 : i32
    return %arg0, %c0_i32, %c0_i32_0 : i32, i32, i32
  }
}

</mosaic_0001>

<llo_original>
// kernel: tpu_custom_call.1
$region0: #{tpu_custom_call.1}
  #allocation0 [shape = 'u32[]', space=smem, size = 0x4, offset = 0x4, fixed_abs, tag = 'smem constant byte address 0x4 - core index']
  #allocation1 [shape = 'u32[144,128]{1,0:T(1,128)}', space=vmem, size = 0x12000, scoped, tag = 'internal scratch']
  %s0 = inlined_call_operand.hbm [shape: f32[2,4,16,16], index: 0, kind: input, shape index: {}]
  %s1 = inlined_call_operand.hbm [shape: f32[2,8,128], index: 1, kind: input, shape index: {}]
  %s2 = inlined_call_operand.hbm [shape: f32[2,8,128], index: 2, kind: input, shape index: {}]
  %s3 = inlined_call_operand.hbm [shape: f32[2,8,128], index: 3, kind: output, shape index: {0}]
  %s4 = inlined_call_operand.hbm [shape: f32[2,8,128], index: 4, kind: output, shape index: {1}]
  %5 = xla_tuple %s3, %s4
  %s6 = sld [smem:[#allocation0]]
  $region65: #{tpu_custom_call.1} parent=0
    _
  %s8 = ssub.s32 1, %s6
  %s9 = scalar_select 0, %s8, %s6
  $region1: #{tpu_custom_call.1} parent=0
    #allocation2 [shape = 'u8[65536]{0}', space=vmem, size = 0x10000, scoped, tag = 'input window, operand 0']
    #allocation3 [shape = 's32[2]{0}', space=sflag, size = 0x8, scoped, tag = 'scoped memory for tpu_custom_call.1']
    #allocation4 [shape = 's32[2]{0}', space=sflag, size = 0x8, scoped, tag = 'scoped memory for tpu_custom_call.1']
    #allocation5 [shape = 'u8[8192]{0}', space=vmem, size = 0x2000, scoped, tag = 'input window, operand 1']
    #allocation6 [shape = 's32[2]{0}', space=sflag, size = 0x8, scoped, tag = 'scoped memory for tpu_custom_call.1']
    #allocation7 [shape = 'u8[8192]{0}', space=vmem, size = 0x2000, scoped, tag = 'input window, operand 2']
    #allocation8 [shape = 'u8[8192]{0}', space=vmem, size = 0x2000, scoped, tag = 'output window, operand 0']
    #allocation9 [shape = 'u8[8192]{0}', space=vmem, size = 0x2000, scoped, tag = 'output window, operand 1']
    #allocation10 [shape = 's32[2]{0}', space=sflag, size = 0x8, scoped, tag = 'scoped memory for tpu_custom_call.1']
    %10 = vsyncpa [#allocation3], 0
    %s11 = scalar_lea.sflag [#allocation3], 1
    %12 = vsyncpa %s11, 0
    %13 = vsyncpa [#allocation6], 0
    %s14 = scalar_lea.sflag [#allocation6], 1
    %15 = vsyncpa %s14, 0
    %16 = vsyncpa [#allocation4], 0
    %s17 = scalar_lea.sflag [#allocation4], 1
    %18 = vsyncpa %s17, 0
    %19 = vsyncpa [#allocation10], 0
    %s20 = scalar_lea.sflag [#allocation10], 1
    %21 = vsyncpa %s20, 0
    loop: start=0, step=1, limit=4
    $region2: #{tpu_custom_call.1} parent=1 // loop_pre_header
      _
    $region3: #{tpu_custom_call.1} parent=1 // loop_header
      %s23 = sphi 0, %s27
      %p24 = scmp.ge.s32.totalorder %s23, 4
      %s33 = sphi 0, %s35
      %s36 = sphi 0, %s33
      %s37 = sphi 0, %s36
      %s53 = sphi 0, %s37
      %s59 = sphi 0, %s61
      %s62 = sphi 0, %s59
      %s63 = sphi 0, %s62
      %s79 = sphi 0, %s63
      %s85 = sphi 0, %s87
      %s88 = sphi 0, %s85
      %s89 = sphi 0, %s88
      %s105 = sphi 0, %s89
      %s111 = sphi 0, %s113
      %s114 = sphi 0, %s111
      %s115 = sphi 0, %s114
      %s131 = sphi 0, %s115
      %s137 = sphi 0, %s139
      %s140 = sphi 0, %s137
      %s141 = sphi 0, %s140
      %s157 = sphi 0, %s141
    $region4: #{tpu_custom_call.1} parent=1 // loop_header_branch
      %26 = sbr.rel (%p24) target = $region8
    $region5: #{tpu_custom_call.1} parent=1 // loop_body
      %s28 = ssub.s32 %s23, 1
      %s29 = ssub.s32 %s23, 2
      %s30 = sadd.s32 %s23, 1
      %s31 = ssub.s32 %s23, %s30
      %p32 = scmp.eq.s32.totalorder %s31, 0
      %s34 = sadd.s32 %s33, 1
      %s35 = scalar_select %p32, %s33, %s34
      %p38 = pneg %p32
      %p39 = scmp.eq.s32.totalorder %s23, 1
      %p40 = por %p38, %p39
      %p41 = scmp.ne.s32.totalorder %s33, %s36
      %p42 = scmp.eq.s32.totalorder %s23, 0
      %p43 = por %p41, %p42
      %p44 = scmp.ne.s32.totalorder %s33, %s36
      %p45 = scmp.eq.s32.totalorder %s28, 1
      %p46 = por %p44, %p45
      %p47 = scmp.ne.s32.totalorder %s36, %s37
      %p48 = scmp.eq.s32.totalorder %s28, 0
      %p49 = por %p47, %p48
      %p50 = scmp.ne.s32.totalorder %s36, %s37
      %p51 = scmp.eq.s32.totalorder %s29, 1
      %p52 = por %p50, %p51
      %p54 = scmp.ne.s32.totalorder %s37, %s53
      %p55 = scmp.eq.s32.totalorder %s29, 0
      %p56 = por %p54, %p55
      %s57 = ssub.s32 %s23, %s30
      %p58 = scmp.eq.s32.totalorder %s57, 0
      %s60 = sadd.s32 %s59, 1
      %s61 = scalar_select %p58, %s59, %s60
      %p64 = pneg %p58
      %p65 = scmp.eq.s32.totalorder %s23, 1
      %p66 = por %p64, %p65
      %p67 = scmp.ne.s32.totalorder %s59, %s62
      %p68 = scmp.eq.s32.totalorder %s23, 0
      %p69 = por %p67, %p68
      %p70 = scmp.ne.s32.totalorder %s59, %s62
      %p71 = scmp.eq.s32.totalorder %s28, 1
      %p72 = por %p70, %p71
      %p73 = scmp.ne.s32.totalorder %s62, %s63
      %p74 = scmp.eq.s32.totalorder %s28, 0
      %p75 = por %p73, %p74
      %p76 = scmp.ne.s32.totalorder %s62, %s63
      %p77 = scmp.eq.s32.totalorder %s29, 1
      %p78 = por %p76, %p77
      %p80 = scmp.ne.s32.totalorder %s63, %s79
      %p81 = scmp.eq.s32.totalorder %s29, 0
      %p82 = por %p80, %p81
      %s83 = ssub.s32 %s23, %s30
      %p84 = scmp.eq.s32.totalorder %s83, 0
      %s86 = sadd.s32 %s85, 1
      %s87 = scalar_select %p84, %s85, %s86
      %p90 = pneg %p84
      %p91 = scmp.eq.s32.totalorder %s23, 1
      %p92 = por %p90, %p91
      %p93 = scmp.ne.s32.totalorder %s85, %s88
      %p94 = scmp.eq.s32.totalorder %s23, 0
      %p95 = por %p93, %p94
      %p96 = scmp.ne.s32.totalorder %s85, %s88
      %p97 = scmp.eq.s32.totalorder %s28, 1
      %p98 = por %p96, %p97
      %p99 = scmp.ne.s32.totalorder %s88, %s89
      %p100 = scmp.eq.s32.totalorder %s28, 0
      %p101 = por %p99, %p100
      %p102 = scmp.ne.s32.totalorder %s88, %s89
      %p103 = scmp.eq.s32.totalorder %s29, 1
      %p104 = por %p102, %p103
      %p106 = scmp.ne.s32.totalorder %s89, %s105
      %p107 = scmp.eq.s32.totalorder %s29, 0
      %p108 = por %p106, %p107
      %s109 = ssub.s32 %s23, %s30
      %p110 = scmp.eq.s32.totalorder %s109, 0
      %s112 = sadd.s32 %s111, 1
      %s113 = scalar_select %p110, %s111, %s112
      %p116 = pneg %p110
      %p117 = scmp.eq.s32.totalorder %s23, 1
      %p118 = por %p116, %p117
      %p119 = scmp.ne.s32.totalorder %s111, %s114
      %p120 = scmp.eq.s32.totalorder %s23, 0
      %p121 = por %p119, %p120
      %p122 = scmp.ne.s32.totalorder %s111, %s114
      %p123 = scmp.eq.s32.totalorder %s28, 1
      %p124 = por %p122, %p123
      %p125 = scmp.ne.s32.totalorder %s114, %s115
      %p126 = scmp.eq.s32.totalorder %s28, 0
      %p127 = por %p125, %p126
      %p128 = scmp.ne.s32.totalorder %s114, %s115
      %p129 = scmp.eq.s32.totalorder %s29, 1
      %p130 = por %p128, %p129
      %p132 = scmp.ne.s32.totalorder %s115, %s131
      %p133 = scmp.eq.s32.totalorder %s29, 0
      %p134 = por %p132, %p133
      %s135 = ssub.s32 %s23, %s30
      %p136 = scmp.eq.s32.totalorder %s135, 0
      %s138 = sadd.s32 %s137, 1
      %s139 = scalar_select %p136, %s137, %s138
      %p142 = pneg %p136
      %p143 = scmp.eq.s32.totalorder %s23, 1
      %p144 = por %p142, %p143
      %p145 = scmp.ne.s32.totalorder %s137, %s140
      %p146 = scmp.eq.s32.totalorder %s23, 0
      %p147 = por %p145, %p146
      %p148 = scmp.ne.s32.totalorder %s137, %s140
      %p149 = scmp.eq.s32.totalorder %s28, 1
      %p150 = por %p148, %p149
      %p151 = scmp.ne.s32.totalorder %s140, %s141
      %p152 = scmp.eq.s32.totalorder %s28, 0
      %p153 = por %p151, %p152
      %p154 = scmp.ne.s32.totalorder %s140, %s141
      %p155 = scmp.eq.s32.totalorder %s29, 1
      %p156 = por %p154, %p155
      %p158 = scmp.ne.s32.totalorder %s141, %s157
      %p159 = scmp.eq.s32.totalorder %s29, 0
      %p160 = por %p158, %p159
      %p161 = scmp.le.s32.totalorder 1, %s23
      %p162 = scmp.lt.s32.totalorder %s23, 3
      %p163 = pnand %p161, %p162
      %p164 = pneg %p163
      // Predicated region
      $region9: #{tpu_custom_call.1} parent=5 // pred_check
        _
      $region10: #{tpu_custom_call.1} parent=5 // pred_check_branch
        %166 = sbr.rel (%p163) target = $region12
      $region11: #{tpu_custom_call.1} parent=5 // pred_region
        %s167 = ssub.s32 %s23, 1
      $region12: #{tpu_custom_call.1} parent=5 // pred_fallthru
        _
      %p168 = scmp.lt.s32.totalorder %s23, 2
      // Predicated region
      $region13: #{tpu_custom_call.1} parent=5 // pred_check
        %p169 = pneg %p168
      $region14: #{tpu_custom_call.1} parent=5 // pred_check_branch
        %171 = sbr.rel (%p169) target = $region16
      $region15: #{tpu_custom_call.1} parent=5 // pred_region
        // Predicated region
        $region17: #{tpu_custom_call.1} parent=15 // pred_check
          %p172 = pneg %p43
        $region18: #{tpu_custom_call.1} parent=15 // pred_check_branch
          %174 = sbr.rel (%p172) target = $region20
        $region19: #{tpu_custom_call.1} parent=15 // pred_region
          %s175 = sand.u32 %s33, 1
          %s176 = scalar_lea.sflag [#allocation3], %s175
          %s177 = sand.u32 %s33, 1
          %s178 = smul.addr %s177, 64
          %s179 = scalar_lea.vmem [#allocation2], %s178
          %s181 = ssub.s32 1024, 1024
          %182 = vsyncadd %s176, %s181
          %s183 = smul.addr %s23, 8
          %s184 = smul.addr %s183, 128
          %s185 = scalar_lea.hbm %s0, %s184
          %s186 = sshll.u32 %s179, 4
          %s187 = int_to_ptr.vmem [resolvable:$true] %s186
          %192 = dma.hbm_to_vmem [thread:$0]  %s185, 1024, %s187, %s176, 128, 128, 8
        $region20: #{tpu_custom_call.1} parent=15 // pred_fallthru
          _
        // Predicated region
        $region21: #{tpu_custom_call.1} parent=15 // pred_check
          %p193 = pneg %p69
        $region22: #{tpu_custom_call.1} parent=15 // pred_check_branch
          %195 = sbr.rel (%p193) target = $region24
        $region23: #{tpu_custom_call.1} parent=15 // pred_region
          %s196 = sand.u32 %s23, 1
          %s197 = scalar_lea.sflag [#allocation6], %s196
          %s198 = sand.u32 %s59, 1
          %s199 = smul.addr %s198, 8
          %s200 = scalar_lea.vmem [#allocation5], %s199
          %s202 = ssub.s32 128, 128
          %203 = vsyncadd %s197, %s202
          %s204 = smul.addr %s23, 128
          %s205 = scalar_lea.hbm %s1, %s204
          %s207 = sshll.u32 %s200, 4
          %s208 = int_to_ptr.vmem [resolvable:$true] %s207
          %210 = dma.hbm_to_vmem [thread:$0]  %s205, 128, %s208, %s197
        $region24: #{tpu_custom_call.1} parent=15 // pred_fallthru
          _
        // Predicated region
        $region25: #{tpu_custom_call.1} parent=15 // pred_check
          %p211 = pneg %p95
        $region26: #{tpu_custom_call.1} parent=15 // pred_check_branch
          %213 = sbr.rel (%p211) target = $region28
        $region27: #{tpu_custom_call.1} parent=15 // pred_region
          %s214 = sand.u32 %s23, 1
          %s215 = scalar_lea.sflag [#allocation6], %s214
          %s216 = sand.u32 %s85, 1
          %s217 = smul.addr %s216, 8
          %s218 = scalar_lea.vmem [#allocation7], %s217
          %s220 = ssub.s32 128, 128
          %221 = vsyncadd %s215, %s220
          %s222 = smul.addr %s23, 128
          %s223 = scalar_lea.hbm %s2, %s222
          %s225 = sshll.u32 %s218, 4
          %s226 = int_to_ptr.vmem [resolvable:$true] %s225
          %228 = dma.hbm_to_vmem [thread:$0]  %s223, 128, %s226, %s215
        $region28: #{tpu_custom_call.1} parent=15 // pred_fallthru
          _
      $region16: #{tpu_custom_call.1} parent=5 // pred_fallthru
        _
      %p229 = scmp.le.s32.totalorder 1, %s23
      %p230 = scmp.lt.s32.totalorder %s23, 3
      %p231 = pnand %p229, %p230
      %p232 = pneg %p231
      // Predicated region
      $region29: #{tpu_custom_call.1} parent=5 // pred_check
        _
      $region30: #{tpu_custom_call.1} parent=5 // pred_check_branch
        %234 = sbr.rel (%p231) target = $region32
      $region31: #{tpu_custom_call.1} parent=5 // pred_region
        %s235 = ssub.s32 %s23, 1
        %s236 = sand.u32 %s36, 1
        %s237 = scalar_lea.sflag [#allocation3], %s236
        %s238 = sand.u32 %s36, 1
        %s239 = smul.addr %s238, 64
        %s240 = scalar_lea.vmem [#allocation2], %s239
        // Predicated region
        $region33: #{tpu_custom_call.1} parent=31 // pred_check
          %p241 = pneg %p49
        $region34: #{tpu_custom_call.1} parent=31 // pred_check_branch
          %243 = sbr.rel (%p241) target = $region36
        $region35: #{tpu_custom_call.1} parent=31 // pred_region
          %244 = dma.done %s237, 1024
        $region36: #{tpu_custom_call.1} parent=31 // pred_fallthru
          _
        %s245 = sand.u32 %s28, 1
        %s246 = scalar_lea.sflag [#allocation6], %s245
        %s247 = sand.u32 %s62, 1
        %s248 = smul.addr %s247, 8
        %s249 = scalar_lea.vmem [#allocation5], %s248
        // Predicated region
        $region37: #{tpu_custom_call.1} parent=31 // pred_check
          %p250 = pneg %p75
        $region38: #{tpu_custom_call.1} parent=31 // pred_check_branch
          %252 = sbr.rel (%p250) target = $region40
        $region39: #{tpu_custom_call.1} parent=31 // pred_region
          %253 = dma.done %s246, 128
        $region40: #{tpu_custom_call.1} parent=31 // pred_fallthru
          _
        %s254 = sand.u32 %s28, 1
        %s255 = scalar_lea.sflag [#allocation6], %s254
        %s256 = sand.u32 %s88, 1
        %s257 = smul.addr %s256, 8
        %s258 = scalar_lea.vmem [#allocation7], %s257
        // Predicated region
        $region41: #{tpu_custom_call.1} parent=31 // pred_check
          %p259 = pneg %p101
        $region42: #{tpu_custom_call.1} parent=31 // pred_check_branch
          %261 = sbr.rel (%p259) target = $region44
        $region43: #{tpu_custom_call.1} parent=31 // pred_region
          %262 = dma.done %s255, 128
        $region44: #{tpu_custom_call.1} parent=31 // pred_fallthru
          _
        %s263 = sand.u32 %s36, 1
        %s264 = scalar_lea.sflag [#allocation3], %s263
        %s265 = sand.u32 %s36, 1
        %s266 = smul.addr %s265, 64
        %s267 = scalar_lea.vmem [#allocation2], %s266
        %p268 = pneg %p49
        %p269 = pneg %p46
        %s270 = sand.u32 %s28, 1
        %s271 = scalar_lea.sflag [#allocation6], %s270
        %s272 = sand.u32 %s62, 1
        %s273 = smul.addr %s272, 8
        %s274 = scalar_lea.vmem [#allocation5], %s273
        %p275 = pneg %p75
        %p276 = pneg %p72
        %s277 = sand.u32 %s28, 1
        %s278 = scalar_lea.sflag [#allocation6], %s277
        %s279 = sand.u32 %s88, 1
        %s280 = smul.addr %s279, 8
        %s281 = scalar_lea.vmem [#allocation7], %s280
        %p282 = pneg %p101
        %p283 = pneg %p98
        %p284 = pneg %p127
        %p285 = pneg %p124
        %s286 = sand.u32 %s114, 1
        %s287 = scalar_lea.sflag [#allocation4], %s286
        %s288 = sand.u32 %s114, 1
        %s289 = smul.addr %s288, 8
        %s290 = scalar_lea.vmem [#allocation8], %s289
        %p291 = pneg %p153
        %p292 = pneg %p150
        %s293 = sand.u32 %s140, 1
        %s294 = scalar_lea.sflag [#allocation10], %s293
        %s295 = sand.u32 %s140, 1
        %s296 = smul.addr %s295, 8
        %s297 = scalar_lea.vmem [#allocation9], %s296
        %v298 = vld [vmem:[%s249] sm:$0xff]
        %v299 = vld [vmem:[%s258] sm:$0xff]
        %v300 = vld [vmem:[%s240] sm:$0xff]
        %v301 = vld [vmem:[%s240 + $0x8] sm:$0xff]
        %vm302 = vcmask 130048
        %v304 = vsel %vm302, %v300, 0
        %v307 = vsel %vm302, %v301, 0
        %309 = vmatprep.subr.mxu0 0.0
        %310 = vmatpush1.msra.mxu0 %v298
        %311 = vmatprep.subr.mxu0 0.0
        %312 = vmatpush1.msra.mxu0 %v299
        %313 = vmatprep.subr.mxu0 0.0
        %314 = vmatpush1.msra.mxu0 0.0
        %315 = vmatprep.subr.mxu0 0.0
        %316 = vmatpush1.msra.mxu0 0.0
        %317 = vmatprep.subr.mxu0 0.0
        %318 = vmatpush1.msra.mxu0 0.0
        %319 = vmatprep.subr.mxu0 0.0
        %320 = vmatpush1.msra.mxu0 0.0
        %321 = vmatprep.subr.mxu0 0.0
        %322 = vmatpush1.msra.mxu0 0.0
        %323 = vmatprep.subr.mxu0 0.0
        %324 = vmatpush1.msra.mxu0 0.0
        %325 = vmatprep.subr.mxu0 0.0
        %326 = vmatpush1.msra.mxu0 0.0
        %327 = vmatprep.subr.mxu0 0.0
        %328 = vmatpush1.msra.mxu0 0.0
        %329 = vmatprep.subr.mxu0 0.0
        %330 = vmatpush1.msra.mxu0 0.0
        %331 = vmatprep.subr.mxu0 0.0
        %332 = vmatpush1.msra.mxu0 0.0
        %333 = vmatprep.subr.mxu0 0.0
        %334 = vmatpush1.msra.mxu0 0.0
        %335 = vmatprep.subr.mxu0 0.0
        %336 = vmatpush1.msra.mxu0 0.0
        %337 = vmatprep.subr.mxu0 0.0
        %338 = vmatpush1.msra.mxu0 0.0
        %339 = vmatprep.subr.mxu0 0.0
        %340 = vmatpush1.msra.mxu0 0.0
        %341 = vmatprep.subr.mxu0 0.0
        %342 = vmatpush1.msra.mxu0 0.0
        %343 = vmatprep.subr.mxu0 0.0
        %344 = vmatpush1.msra.mxu0 0.0
        %345 = vmatprep.subr.mxu0 0.0
        %346 = vmatpush1.msra.mxu0 0.0
        %347 = vmatprep.subr.mxu0 0.0
        %348 = vmatpush1.msra.mxu0 0.0
        %349 = vmatprep.subr.mxu0 0.0
        %350 = vmatpush1.msra.mxu0 0.0
        %351 = vmatprep.subr.mxu0 0.0
        %352 = vmatpush1.msra.mxu0 0.0
        %353 = vmatprep.subr.mxu0 0.0
        %354 = vmatpush1.msra.mxu0 0.0
        %355 = vmatprep.subr.mxu0 0.0
        %356 = vmatpush1.msra.mxu0 0.0
        %357 = vmatprep.subr.mxu0 0.0
        %358 = vmatpush1.msra.mxu0 0.0
        %359 = vmatprep.subr.mxu0 0.0
        %360 = vmatpush1.msra.mxu0 0.0
        %361 = vmatprep.subr.mxu0 0.0
        %362 = vmatpush1.msra.mxu0 0.0
        %363 = vmatprep.subr.mxu0 0.0
        %364 = vmatpush1.msra.mxu0 0.0
        %365 = vmatprep.subr.mxu0 0.0
        %366 = vmatpush1.msra.mxu0 0.0
        %367 = vmatprep.subr.mxu0 0.0
        %368 = vmatpush1.msra.mxu0 0.0
        %369 = vmatprep.subr.mxu0 0.0
        %370 = vmatpush1.msra.mxu0 0.0
        %371 = vmatprep.subr.mxu0 0.0
        %372 = vmatpush1.msra.mxu0 0.0
        %373 = vmatprep.mubr.f32.mxu0 0.0
        %374 = vmatmul.mubr.f32.gmra.mrb[0].mxu0 %v304
        %v375 = vpop.f32.mrb[0].mxu0
        %v376 = vadd.f32 0.0, %v375
        %v377 = vpop.f32.mrb[0].mxu0
        %378 = vmatprep.mubr.f32.mxu0 0.0
        %379 = vmatmul.mubr.f32.gmra.mrb[0].mxu0 %v307
        %v380 = vpop.f32.mrb[0].mxu0
        %v381 = vadd.f32 0.0, %v380
        %v382 = vpop.f32.mrb[0].mxu0
        %383 = vdwg.mxu0
        %v384 = vadd.f32 %v298, %v376
        %v385 = vadd.f32 %v299, %v381
        %386 = vmatprep.subr.mxu0 0.0
        %387 = vmatpush1.msra.mxu0 %v376
        %388 = vmatprep.subr.mxu0 0.0
        %389 = vmatpush1.msra.mxu0 %v381
        %390 = vmatprep.subr.mxu0 0.0
        %391 = vmatpush1.msra.mxu0 0.0
        %392 = vmatprep.subr.mxu0 0.0
        %393 = vmatpush1.msra.mxu0 0.0
        %394 = vmatprep.subr.mxu0 0.0
        %395 = vmatpush1.msra.mxu0 0.0
        %396 = vmatprep.subr.mxu0 0.0
        %397 = vmatpush1.msra.mxu0 0.0
        %398 = vmatprep.subr.mxu0 0.0
        %399 = vmatpush1.msra.mxu0 0.0
        %400 = vmatprep.subr.mxu0 0.0
        %401 = vmatpush1.msra.mxu0 0.0
        %402 = vmatprep.subr.mxu0 0.0
        %403 = vmatpush1.msra.mxu0 0.0
        %404 = vmatprep.subr.mxu0 0.0
        %405 = vmatpush1.msra.mxu0 0.0
        %406 = vmatprep.subr.mxu0 0.0
        %407 = vmatpush1.msra.mxu0 0.0
        %408 = vmatprep.subr.mxu0 0.0
        %409 = vmatpush1.msra.mxu0 0.0
        %410 = vmatprep.subr.mxu0 0.0
        %411 = vmatpush1.msra.mxu0 0.0
        %412 = vmatprep.subr.mxu0 0.0
        %413 = vmatpush1.msra.mxu0 0.0
        %414 = vmatprep.subr.mxu0 0.0
        %415 = vmatpush1.msra.mxu0 0.0
        %416 = vmatprep.subr.mxu0 0.0
        %417 = vmatpush1.msra.mxu0 0.0
        %418 = vmatprep.subr.mxu0 0.0
        %419 = vmatpush1.msra.mxu0 0.0
        %420 = vmatprep.subr.mxu0 0.0
        %421 = vmatpush1.msra.mxu0 0.0
        %422 = vmatprep.subr.mxu0 0.0
        %423 = vmatpush1.msra.mxu0 0.0
        %424 = vmatprep.subr.mxu0 0.0
        %425 = vmatpush1.msra.mxu0 0.0
        %426 = vmatprep.subr.mxu0 0.0
        %427 = vmatpush1.msra.mxu0 0.0
        %428 = vmatprep.subr.mxu0 0.0
        %429 = vmatpush1.msra.mxu0 0.0
        %430 = vmatprep.subr.mxu0 0.0
        %431 = vmatpush1.msra.mxu0 0.0
        %432 = vmatprep.subr.mxu0 0.0
        %433 = vmatpush1.msra.mxu0 0.0
        %434 = vmatprep.subr.mxu0 0.0
        %435 = vmatpush1.msra.mxu0 0.0
        %436 = vmatprep.subr.mxu0 0.0
        %437 = vmatpush1.msra.mxu0 0.0
        %438 = vmatprep.subr.mxu0 0.0
        %439 = vmatpush1.msra.mxu0 0.0
        %440 = vmatprep.subr.mxu0 0.0
        %441 = vmatpush1.msra.mxu0 0.0
        %442 = vmatprep.subr.mxu0 0.0
        %443 = vmatpush1.msra.mxu0 0.0
        %444 = vmatprep.subr.mxu0 0.0
        %445 = vmatpush1.msra.mxu0 0.0
        %446 = vmatprep.subr.mxu0 0.0
        %447 = vmatpush1.msra.mxu0 0.0
        %448 = vmatprep.subr.mxu0 0.0
        %449 = vmatpush1.msra.mxu0 0.0
        %450 = vmatprep.mubr.f32.mxu0 0.0
        %451 = vmatmul.mubr.f32.gmra.mrb[0].mxu0 %v304
        %v452 = vpop.f32.mrb[0].mxu0
        %v453 = vadd.f32 0.0, %v452
        %v454 = vpop.f32.mrb[0].mxu0
        %455 = vmatprep.mubr.f32.mxu0 0.0
        %456 = vmatmul.mubr.f32.gmra.mrb[0].mxu0 %v307
        %v457 = vpop.f32.mrb[0].mxu0
        %v458 = vadd.f32 0.0, %v457
        %v459 = vpop.f32.mrb[0].mxu0
        %460 = vdwg.mxu0
        %v461 = vadd.f32 %v384, %v453
        %v462 = vadd.f32 %v385, %v458
        %s463 = scalar_lea.vmem %s240, 16 [#allocation2]
        %v464 = vld [vmem:[%s463] sm:$0xff]
        %v465 = vld [vmem:[%s463 + $0x8] sm:$0xff]
        %468 = vrot.lane.b32.xlu0 %v298, 96
        %v469 = vpop.permute.xlu0 %468
        %470 = vrot.lane.b32.xlu0 %v299, 96
        %v471 = vpop.permute.xlu0 %470
        %v475 = vsel %vm302, %v464, 0
        %v478 = vsel %vm302, %v465, 0
        %480 = vmatprep.subr.mxu0 0.0
        %481 = vmatpush1.msra.mxu0 %v469
        %482 = vmatprep.subr.mxu0 0.0
        %483 = vmatpush1.msra.mxu0 %v471
        %484 = vmatprep.subr.mxu0 0.0
        %485 = vmatpush1.msra.mxu0 0.0
        %486 = vmatprep.subr.mxu0 0.0
        %487 = vmatpush1.msra.mxu0 0.0
        %488 = vmatprep.subr.mxu0 0.0
        %489 = vmatpush1.msra.mxu0 0.0
        %490 = vmatprep.subr.mxu0 0.0
        %491 = vmatpush1.msra.mxu0 0.0
        %492 = vmatprep.subr.mxu0 0.0
        %493 = vmatpush1.msra.mxu0 0.0
        %494 = vmatprep.subr.mxu0 0.0
        %495 = vmatpush1.msra.mxu0 0.0
        %496 = vmatprep.subr.mxu0 0.0
        %497 = vmatpush1.msra.mxu0 0.0
        %498 = vmatprep.subr.mxu0 0.0
        %499 = vmatpush1.msra.mxu0 0.0
        %500 = vmatprep.subr.mxu0 0.0
        %501 = vmatpush1.msra.mxu0 0.0
        %502 = vmatprep.subr.mxu0 0.0
        %503 = vmatpush1.msra.mxu0 0.0
        %504 = vmatprep.subr.mxu0 0.0
        %505 = vmatpush1.msra.mxu0 0.0
        %506 = vmatprep.subr.mxu0 0.0
        %507 = vmatpush1.msra.mxu0 0.0
        %508 = vmatprep.subr.mxu0 0.0
        %509 = vmatpush1.msra.mxu0 0.0
        %510 = vmatprep.subr.mxu0 0.0
        %511 = vmatpush1.msra.mxu0 0.0
        %512 = vmatprep.subr.mxu0 0.0
        %513 = vmatpush1.msra.mxu0 0.0
        %514 = vmatprep.subr.mxu0 0.0
        %515 = vmatpush1.msra.mxu0 0.0
        %516 = vmatprep.subr.mxu0 0.0
        %517 = vmatpush1.msra.mxu0 0.0
        %518 = vmatprep.subr.mxu0 0.0
        %519 = vmatpush1.msra.mxu0 0.0
        %520 = vmatprep.subr.mxu0 0.0
        %521 = vmatpush1.msra.mxu0 0.0
        %522 = vmatprep.subr.mxu0 0.0
        %523 = vmatpush1.msra.mxu0 0.0
        %524 = vmatprep.subr.mxu0 0.0
        %525 = vmatpush1.msra.mxu0 0.0
        %526 = vmatprep.subr.mxu0 0.0
        %527 = vmatpush1.msra.mxu0 0.0
        %528 = vmatprep.subr.mxu0 0.0
        %529 = vmatpush1.msra.mxu0 0.0
        %530 = vmatprep.subr.mxu0 0.0
        %531 = vmatpush1.msra.mxu0 0.0
        %532 = vmatprep.subr.mxu0 0.0
        %533 = vmatpush1.msra.mxu0 0.0
        %534 = vmatprep.subr.mxu0 0.0
        %535 = vmatpush1.msra.mxu0 0.0
        %536 = vmatprep.subr.mxu0 0.0
        %537 = vmatpush1.msra.mxu0 0.0
        %538 = vmatprep.subr.mxu0 0.0
        %539 = vmatpush1.msra.mxu0 0.0
        %540 = vmatprep.subr.mxu0 0.0
        %541 = vmatpush1.msra.mxu0 0.0
        %542 = vmatprep.subr.mxu0 0.0
        %543 = vmatpush1.msra.mxu0 0.0
        %544 = vmatprep.mubr.f32.mxu0 0.0
        %545 = vmatmul.mubr.f32.gmra.mrb[0].mxu0 %v475
        %v546 = vpop.f32.mrb[0].mxu0
        %v547 = vadd.f32 0.0, %v546
        %v548 = vpop.f32.mrb[0].mxu0
        %549 = vmatprep.mubr.f32.mxu0 0.0
        %550 = vmatmul.mubr.f32.gmra.mrb[0].mxu0 %v478
        %v551 = vpop.f32.mrb[0].mxu0
        %v552 = vadd.f32 0.0, %v551
        %v553 = vpop.f32.mrb[0].mxu0
        %554 = vdwg.mxu0
        %557 = vrot.lane.b32.xlu0 %v547, 32
        %v558 = vpop.permute.xlu0 %557
        %559 = vrot.lane.b32.xlu0 %v552, 32
        %v560 = vpop.permute.xlu0 %559
        %v563 = vadd.f32 %v298, %v558
        %v564 = vadd.f32 %v299, %v560
        %565 = vmatprep.subr.mxu0 0.0
        %566 = vmatpush1.msra.mxu0 %v547
        %567 = vmatprep.subr.mxu0 0.0
        %568 = vmatpush1.msra.mxu0 %v552
        %569 = vmatprep.subr.mxu0 0.0
        %570 = vmatpush1.msra.mxu0 0.0
        %571 = vmatprep.subr.mxu0 0.0
        %572 = vmatpush1.msra.mxu0 0.0
        %573 = vmatprep.subr.mxu0 0.0
        %574 = vmatpush1.msra.mxu0 0.0
        %575 = vmatprep.subr.mxu0 0.0
        %576 = vmatpush1.msra.mxu0 0.0
        %577 = vmatprep.subr.mxu0 0.0
        %578 = vmatpush1.msra.mxu0 0.0
        %579 = vmatprep.subr.mxu0 0.0
        %580 = vmatpush1.msra.mxu0 0.0
        %581 = vmatprep.subr.mxu0 0.0
        %582 = vmatpush1.msra.mxu0 0.0
        %583 = vmatprep.subr.mxu0 0.0
        %584 = vmatpush1.msra.mxu0 0.0
        %585 = vmatprep.subr.mxu0 0.0
        %586 = vmatpush1.msra.mxu0 0.0
        %587 = vmatprep.subr.mxu0 0.0
        %588 = vmatpush1.msra.mxu0 0.0
        %589 = vmatprep.subr.mxu0 0.0
        %590 = vmatpush1.msra.mxu0 0.0
        %591 = vmatprep.subr.mxu0 0.0
        %592 = vmatpush1.msra.mxu0 0.0
        %593 = vmatprep.subr.mxu0 0.0
        %594 = vmatpush1.msra.mxu0 0.0
        %595 = vmatprep.subr.mxu0 0.0
        %596 = vmatpush1.msra.mxu0 0.0
        %597 = vmatprep.subr.mxu0 0.0
        %598 = vmatpush1.msra.mxu0 0.0
        %599 = vmatprep.subr.mxu0 0.0
        %600 = vmatpush1.msra.mxu0 0.0
        %601 = vmatprep.subr.mxu0 0.0
        %602 = vmatpush1.msra.mxu0 0.0
        %603 = vmatprep.subr.mxu0 0.0
        %604 = vmatpush1.msra.mxu0 0.0
        %605 = vmatprep.subr.mxu0 0.0
        %606 = vmatpush1.msra.mxu0 0.0
        %607 = vmatprep.subr.mxu0 0.0
        %608 = vmatpush1.msra.mxu0 0.0
        %609 = vmatprep.subr.mxu0 0.0
        %610 = vmatpush1.msra.mxu0 0.0
        %611 = vmatprep.subr.mxu0 0.0
        %612 = vmatpush1.msra.mxu0 0.0
        %613 = vmatprep.subr.mxu0 0.0
        %614 = vmatpush1.msra.mxu0 0.0
        %615 = vmatprep.subr.mxu0 0.0
        %616 = vmatpush1.msra.mxu0 0.0
        %617 = vmatprep.subr.mxu0 0.0
        %618 = vmatpush1.msra.mxu0 0.0
        %619 = vmatprep.subr.mxu0 0.0
        %620 = vmatpush1.msra.mxu0 0.0
        %621 = vmatprep.subr.mxu0 0.0
        %622 = vmatpush1.msra.mxu0 0.0
        %623 = vmatprep.subr.mxu0 0.0
        %624 = vmatpush1.msra.mxu0 0.0
        %625 = vmatprep.subr.mxu0 0.0
        %626 = vmatpush1.msra.mxu0 0.0
        %627 = vmatprep.subr.mxu0 0.0
        %628 = vmatpush1.msra.mxu0 0.0
        %629 = vmatprep.mubr.f32.mxu0 0.0
        %630 = vmatmul.mubr.f32.gmra.mrb[0].mxu0 %v475
        %v631 = vpop.f32.mrb[0].mxu0
        %v632 = vadd.f32 0.0, %v631
        %v633 = vpop.f32.mrb[0].mxu0
        %634 = vmatprep.mubr.f32.mxu0 0.0
        %635 = vmatmul.mubr.f32.gmra.mrb[0].mxu0 %v478
        %v636 = vpop.f32.mrb[0].mxu0
        %v637 = vadd.f32 0.0, %v636
        %v638 = vpop.f32.mrb[0].mxu0
        %639 = vdwg.mxu0
        %642 = vrot.lane.b32.xlu0 %v632, 32
        %v643 = vpop.permute.xlu0 %642
        %644 = vrot.lane.b32.xlu0 %v637, 32
        %v645 = vpop.permute.xlu0 %644
        %v648 = vadd.f32 %v563, %v643
        %v649 = vadd.f32 %v564, %v645
        %s650 = scalar_lea.vmem %s240, 32 [#allocation2]
        %v651 = vld [vmem:[%s650] sm:$0xff]
        %v652 = vld [vmem:[%s650 + $0x8] sm:$0xff]
        %653 = vrot.lane.b32.xlu0 %v298, 64
        %v654 = vpop.permute.xlu0 %653
        %655 = vrot.lane.b32.xlu0 %v299, 64
        %v656 = vpop.permute.xlu0 %655
        %v660 = vsel %vm302, %v651, 0
        %v663 = vsel %vm302, %v652, 0
        %665 = vmatprep.subr.mxu0 0.0
        %666 = vmatpush1.msra.mxu0 %v654
        %667 = vmatprep.subr.mxu0 0.0
        %668 = vmatpush1.msra.mxu0 %v656
        %669 = vmatprep.subr.mxu0 0.0
        %670 = vmatpush1.msra.mxu0 0.0
        %671 = vmatprep.subr.mxu0 0.0
        %672 = vmatpush1.msra.mxu0 0.0
        %673 = vmatprep.subr.mxu0 0.0
        %674 = vmatpush1.msra.mxu0 0.0
        %675 = vmatprep.subr.mxu0 0.0
        %676 = vmatpush1.msra.mxu0 0.0
        %677 = vmatprep.subr.mxu0 0.0
        %678 = vmatpush1.msra.mxu0 0.0
        %679 = vmatprep.subr.mxu0 0.0
        %680 = vmatpush1.msra.mxu0 0.0
        %681 = vmatprep.subr.mxu0 0.0
        %682 = vmatpush1.msra.mxu0 0.0
        %683 = vmatprep.subr.mxu0 0.0
        %684 = vmatpush1.msra.mxu0 0.0
        %685 = vmatprep.subr.mxu0 0.0
        %686 = vmatpush1.msra.mxu0 0.0
        %687 = vmatprep.subr.mxu0 0.0
        %688 = vmatpush1.msra.mxu0 0.0
        %689 = vmatprep.subr.mxu0 0.0
        %690 = vmatpush1.msra.mxu0 0.0
        %691 = vmatprep.subr.mxu0 0.0
        %692 = vmatpush1.msra.mxu0 0.0
        %693 = vmatprep.subr.mxu0 0.0
        %694 = vmatpush1.msra.mxu0 0.0
        %695 = vmatprep.subr.mxu0 0.0
        %696 = vmatpush1.msra.mxu0 0.0
        %697 = vmatprep.subr.mxu0 0.0
        %698 = vmatpush1.msra.mxu0 0.0
        %699 = vmatprep.subr.mxu0 0.0
        %700 = vmatpush1.msra.mxu0 0.0
        %701 = vmatprep.subr.mxu0 0.0
        %702 = vmatpush1.msra.mxu0 0.0
        %703 = vmatprep.subr.mxu0 0.0
        %704 = vmatpush1.msra.mxu0 0.0
        %705 = vmatprep.subr.mxu0 0.0
        %706 = vmatpush1.msra.mxu0 0.0
        %707 = vmatprep.subr.mxu0 0.0
        %708 = vmatpush1.msra.mxu0 0.0
        %709 = vmatprep.subr.mxu0 0.0
        %710 = vmatpush1.msra.mxu0 0.0
        %711 = vmatprep.subr.mxu0 0.0
        %712 = vmatpush1.msra.mxu0 0.0
        %713 = vmatprep.subr.mxu0 0.0
        %714 = vmatpush1.msra.mxu0 0.0
        %715 = vmatprep.subr.mxu0 0.0
        %716 = vmatpush1.msra.mxu0 0.0
        %717 = vmatprep.subr.mxu0 0.0
        %718 = vmatpush1.msra.mxu0 0.0
        %719 = vmatprep.subr.mxu0 0.0
        %720 = vmatpush1.msra.mxu0 0.0
        %721 = vmatprep.subr.mxu0 0.0
        %722 = vmatpush1.msra.mxu0 0.0
        %723 = vmatprep.subr.mxu0 0.0
        %724 = vmatpush1.msra.mxu0 0.0
        %725 = vmatprep.subr.mxu0 0.0
        %726 = vmatpush1.msra.mxu0 0.0
        %727 = vmatprep.subr.mxu0 0.0
        %728 = vmatpush1.msra.mxu0 0.0
        %729 = vmatprep.mubr.f32.mxu0 0.0
        %730 = vmatmul.mubr.f32.gmra.mrb[0].mxu0 %v660
        %v731 = vpop.f32.mrb[0].mxu0
        %v732 = vadd.f32 0.0, %v731
        %v733 = vpop.f32.mrb[0].mxu0
        %734 = vmatprep.mubr.f32.mxu0 0.0
        %735 = vmatmul.mubr.f32.gmra.mrb[0].mxu0 %v663
        %v736 = vpop.f32.mrb[0].mxu0
        %v737 = vadd.f32 0.0, %v736
        %v738 = vpop.f32.mrb[0].mxu0
        %739 = vdwg.mxu0
        %742 = vrot.lane.b32.xlu0 %v732, 64
        %v743 = vpop.permute.xlu0 %742
        %744 = vrot.lane.b32.xlu0 %v737, 64
        %v745 = vpop.permute.xlu0 %744
        %v748 = vadd.f32 %v298, %v743
        %v749 = vadd.f32 %v299, %v745
        %750 = vmatprep.subr.mxu0 0.0
        %751 = vmatpush1.msra.mxu0 %v732
        %752 = vmatprep.subr.mxu0 0.0
        %753 = vmatpush1.msra.mxu0 %v737
        %754 = vmatprep.subr.mxu0 0.0
        %755 = vmatpush1.msra.mxu0 0.0
        %756 = vmatprep.subr.mxu0 0.0
        %757 = vmatpush1.msra.mxu0 0.0
        %758 = vmatprep.subr.mxu0 0.0
        %759 = vmatpush1.msra.mxu0 0.0
        %760 = vmatprep.subr.mxu0 0.0
        %761 = vmatpush1.msra.mxu0 0.0
        %762 = vmatprep.subr.mxu0 0.0
        %763 = vmatpush1.msra.mxu0 0.0
        %764 = vmatprep.subr.mxu0 0.0
        %765 = vmatpush1.msra.mxu0 0.0
        %766 = vmatprep.subr.mxu0 0.0
        %767 = vmatpush1.msra.mxu0 0.0
        %768 = vmatprep.subr.mxu0 0.0
        %769 = vmatpush1.msra.mxu0 0.0
        %770 = vmatprep.subr.mxu0 0.0
        %771 = vmatpush1.msra.mxu0 0.0
        %772 = vmatprep.subr.mxu0 0.0
        %773 = vmatpush1.msra.mxu0 0.0
        %774 = vmatprep.subr.mxu0 0.0
        %775 = vmatpush1.msra.mxu0 0.0
        %776 = vmatprep.subr.mxu0 0.0
        %777 = vmatpush1.msra.mxu0 0.0
        %778 = vmatprep.subr.mxu0 0.0
        %779 = vmatpush1.msra.mxu0 0.0
        %780 = vmatprep.subr.mxu0 0.0
        %781 = vmatpush1.msra.mxu0 0.0
        %782 = vmatprep.subr.mxu0 0.0
        %783 = vmatpush1.msra.mxu0 0.0
        %784 = vmatprep.subr.mxu0 0.0
        %785 = vmatpush1.msra.mxu0 0.0
        %786 = vmatprep.subr.mxu0 0.0
        %787 = vmatpush1.msra.mxu0 0.0
        %788 = vmatprep.subr.mxu0 0.0
        %789 = vmatpush1.msra.mxu0 0.0
        %790 = vmatprep.subr.mxu0 0.0
        %791 = vmatpush1.msra.mxu0 0.0
        %792 = vmatprep.subr.mxu0 0.0
        %793 = vmatpush1.msra.mxu0 0.0
        %794 = vmatprep.subr.mxu0 0.0
        %795 = vmatpush1.msra.mxu0 0.0
        %796 = vmatprep.subr.mxu0 0.0
        %797 = vmatpush1.msra.mxu0 0.0
        %798 = vmatprep.subr.mxu0 0.0
        %799 = vmatpush1.msra.mxu0 0.0
        %800 = vmatprep.subr.mxu0 0.0
        %801 = vmatpush1.msra.mxu0 0.0
        %802 = vmatprep.subr.mxu0 0.0
        %803 = vmatpush1.msra.mxu0 0.0
        %804 = vmatprep.subr.mxu0 0.0
        %805 = vmatpush1.msra.mxu0 0.0
        %806 = vmatprep.subr.mxu0 0.0
        %807 = vmatpush1.msra.mxu0 0.0
        %808 = vmatprep.subr.mxu0 0.0
        %809 = vmatpush1.msra.mxu0 0.0
        %810 = vmatprep.subr.mxu0 0.0
        %811 = vmatpush1.msra.mxu0 0.0
        %812 = vmatprep.subr.mxu0 0.0
        %813 = vmatpush1.msra.mxu0 0.0
        %814 = vmatprep.mubr.f32.mxu0 0.0
        %815 = vmatmul.mubr.f32.gmra.mrb[0].mxu0 %v660
        %v816 = vpop.f32.mrb[0].mxu0
        %v817 = vadd.f32 0.0, %v816
        %v818 = vpop.f32.mrb[0].mxu0
        %819 = vmatprep.mubr.f32.mxu0 0.0
        %820 = vmatmul.mubr.f32.gmra.mrb[0].mxu0 %v663
        %v821 = vpop.f32.mrb[0].mxu0
        %v822 = vadd.f32 0.0, %v821
        %v823 = vpop.f32.mrb[0].mxu0
        %824 = vdwg.mxu0
        %827 = vrot.lane.b32.xlu0 %v817, 64
        %v828 = vpop.permute.xlu0 %827
        %829 = vrot.lane.b32.xlu0 %v822, 64
        %v830 = vpop.permute.xlu0 %829
        %v833 = vadd.f32 %v748, %v828
        %v834 = vadd.f32 %v749, %v830
        %s835 = scalar_lea.vmem %s240, 48 [#allocation2]
        %v836 = vld [vmem:[%s835] sm:$0xff]
        %v837 = vld [vmem:[%s835 + $0x8] sm:$0xff]
        %838 = vrot.lane.b32.xlu0 %v298, 32
        %v839 = vpop.permute.xlu0 %838
        %840 = vrot.lane.b32.xlu0 %v299, 32
        %v841 = vpop.permute.xlu0 %840
        %v845 = vsel %vm302, %v836, 0
        %v848 = vsel %vm302, %v837, 0
        %850 = vmatprep.subr.mxu0 0.0
        %851 = vmatpush1.msra.mxu0 %v839
        %852 = vmatprep.subr.mxu0 0.0
        %853 = vmatpush1.msra.mxu0 %v841
        %854 = vmatprep.subr.mxu0 0.0
        %855 = vmatpush1.msra.mxu0 0.0
        %856 = vmatprep.subr.mxu0 0.0
        %857 = vmatpush1.msra.mxu0 0.0
        %858 = vmatprep.subr.mxu0 0.0
        %859 = vmatpush1.msra.mxu0 0.0
        %860 = vmatprep.subr.mxu0 0.0
        %861 = vmatpush1.msra.mxu0 0.0
        %862 = vmatprep.subr.mxu0 0.0
        %863 = vmatpush1.msra.mxu0 0.0
        %864 = vmatprep.subr.mxu0 0.0
        %865 = vmatpush1.msra.mxu0 0.0
        %866 = vmatprep.subr.mxu0 0.0
        %867 = vmatpush1.msra.mxu0 0.0
        %868 = vmatprep.subr.mxu0 0.0
        %869 = vmatpush1.msra.mxu0 0.0
        %870 = vmatprep.subr.mxu0 0.0
        %871 = vmatpush1.msra.mxu0 0.0
        %872 = vmatprep.subr.mxu0 0.0
        %873 = vmatpush1.msra.mxu0 0.0
        %874 = vmatprep.subr.mxu0 0.0
        %875 = vmatpush1.msra.mxu0 0.0
        %876 = vmatprep.subr.mxu0 0.0
        %877 = vmatpush1.msra.mxu0 0.0
        %878 = vmatprep.subr.mxu0 0.0
        %879 = vmatpush1.msra.mxu0 0.0
        %880 = vmatprep.subr.mxu0 0.0
        %881 = vmatpush1.msra.mxu0 0.0
        %882 = vmatprep.subr.mxu0 0.0
        %883 = vmatpush1.msra.mxu0 0.0
        %884 = vmatprep.subr.mxu0 0.0
        %885 = vmatpush1.msra.mxu0 0.0
        %886 = vmatprep.subr.mxu0 0.0
        %887 = vmatpush1.msra.mxu0 0.0
        %888 = vmatprep.subr.mxu0 0.0
        %889 = vmatpush1.msra.mxu0 0.0
        %890 = vmatprep.subr.mxu0 0.0
        %891 = vmatpush1.msra.mxu0 0.0
        %892 = vmatprep.subr.mxu0 0.0
        %893 = vmatpush1.msra.mxu0 0.0
        %894 = vmatprep.subr.mxu0 0.0
        %895 = vmatpush1.msra.mxu0 0.0
        %896 = vmatprep.subr.mxu0 0.0
        %897 = vmatpush1.msra.mxu0 0.0
        %898 = vmatprep.subr.mxu0 0.0
        %899 = vmatpush1.msra.mxu0 0.0
        %900 = vmatprep.subr.mxu0 0.0
        %901 = vmatpush1.msra.mxu0 0.0
        %902 = vmatprep.subr.mxu0 0.0
        %903 = vmatpush1.msra.mxu0 0.0
        %904 = vmatprep.subr.mxu0 0.0
        %905 = vmatpush1.msra.mxu0 0.0
        %906 = vmatprep.subr.mxu0 0.0
        %907 = vmatpush1.msra.mxu0 0.0
        %908 = vmatprep.subr.mxu0 0.0
        %909 = vmatpush1.msra.mxu0 0.0
        %910 = vmatprep.subr.mxu0 0.0
        %911 = vmatpush1.msra.mxu0 0.0
        %912 = vmatprep.subr.mxu0 0.0
        %913 = vmatpush1.msra.mxu0 0.0
        %914 = vmatprep.mubr.f32.mxu0 0.0
        %915 = vmatmul.mubr.f32.gmra.mrb[0].mxu0 %v845
        %v916 = vpop.f32.mrb[0].mxu0
        %v917 = vadd.f32 0.0, %v916
        %v918 = vpop.f32.mrb[0].mxu0
        %919 = vmatprep.mubr.f32.mxu0 0.0
        %920 = vmatmul.mubr.f32.gmra.mrb[0].mxu0 %v848
        %v921 = vpop.f32.mrb[0].mxu0
        %v922 = vadd.f32 0.0, %v921
        %v923 = vpop.f32.mrb[0].mxu0
        %924 = vdwg.mxu0
        %927 = vrot.lane.b32.xlu0 %v917, 96
        %v928 = vpop.permute.xlu0 %927
        %929 = vrot.lane.b32.xlu0 %v922, 96
        %v930 = vpop.permute.xlu0 %929
        %v933 = vadd.f32 %v298, %v928
        %v934 = vadd.f32 %v299, %v930
        %935 = vmatprep.subr.mxu0 0.0
        %936 = vmatpush1.msra.mxu0 %v917
        %937 = vmatprep.subr.mxu0 0.0
        %938 = vmatpush1.msra.mxu0 %v922
        %939 = vmatprep.subr.mxu0 0.0
        %940 = vmatpush1.msra.mxu0 0.0
        %941 = vmatprep.subr.mxu0 0.0
        %942 = vmatpush1.msra.mxu0 0.0
        %943 = vmatprep.subr.mxu0 0.0
        %944 = vmatpush1.msra.mxu0 0.0
        %945 = vmatprep.subr.mxu0 0.0
        %946 = vmatpush1.msra.mxu0 0.0
        %947 = vmatprep.subr.mxu0 0.0
        %948 = vmatpush1.msra.mxu0 0.0
        %949 = vmatprep.subr.mxu0 0.0
        %950 = vmatpush1.msra.mxu0 0.0
        %951 = vmatprep.subr.mxu0 0.0
        %952 = vmatpush1.msra.mxu0 0.0
        %953 = vmatprep.subr.mxu0 0.0
        %954 = vmatpush1.msra.mxu0 0.0
        %955 = vmatprep.subr.mxu0 0.0
        %956 = vmatpush1.msra.mxu0 0.0
        %957 = vmatprep.subr.mxu0 0.0
        %958 = vmatpush1.msra.mxu0 0.0
        %959 = vmatprep.subr.mxu0 0.0
        %960 = vmatpush1.msra.mxu0 0.0
        %961 = vmatprep.subr.mxu0 0.0
        %962 = vmatpush1.msra.mxu0 0.0
        %963 = vmatprep.subr.mxu0 0.0
        %964 = vmatpush1.msra.mxu0 0.0
        %965 = vmatprep.subr.mxu0 0.0
        %966 = vmatpush1.msra.mxu0 0.0
        %967 = vmatprep.subr.mxu0 0.0
        %968 = vmatpush1.msra.mxu0 0.0
        %969 = vmatprep.subr.mxu0 0.0
        %970 = vmatpush1.msra.mxu0 0.0
        %971 = vmatprep.subr.mxu0 0.0
        %972 = vmatpush1.msra.mxu0 0.0
        %973 = vmatprep.subr.mxu0 0.0
        %974 = vmatpush1.msra.mxu0 0.0
        %975 = vmatprep.subr.mxu0 0.0
        %976 = vmatpush1.msra.mxu0 0.0
        %977 = vmatprep.subr.mxu0 0.0
        %978 = vmatpush1.msra.mxu0 0.0
        %979 = vmatprep.subr.mxu0 0.0
        %980 = vmatpush1.msra.mxu0 0.0
        %981 = vmatprep.subr.mxu0 0.0
        %982 = vmatpush1.msra.mxu0 0.0
        %983 = vmatprep.subr.mxu0 0.0
        %984 = vmatpush1.msra.mxu0 0.0
        %985 = vmatprep.subr.mxu0 0.0
        %986 = vmatpush1.msra.mxu0 0.0
        %987 = vmatprep.subr.mxu0 0.0
        %988 = vmatpush1.msra.mxu0 0.0
        %989 = vmatprep.subr.mxu0 0.0
        %990 = vmatpush1.msra.mxu0 0.0
        %991 = vmatprep.subr.mxu0 0.0
        %992 = vmatpush1.msra.mxu0 0.0
        %993 = vmatprep.subr.mxu0 0.0
        %994 = vmatpush1.msra.mxu0 0.0
        %995 = vmatprep.subr.mxu0 0.0
        %996 = vmatpush1.msra.mxu0 0.0
        %997 = vmatprep.subr.mxu0 0.0
        %998 = vmatpush1.msra.mxu0 0.0
        %999 = vmatprep.mubr.f32.mxu0 0.0
        %1000 = vmatmul.mubr.f32.gmra.mrb[0].mxu0 %v845
        %v1001 = vpop.f32.mrb[0].mxu0
        %v1002 = vadd.f32 0.0, %v1001
        %v1003 = vpop.f32.mrb[0].mxu0
        %1004 = vmatprep.mubr.f32.mxu0 0.0
        %1005 = vmatmul.mubr.f32.gmra.mrb[0].mxu0 %v848
        %v1006 = vpop.f32.mrb[0].mxu0
        %v1007 = vadd.f32 0.0, %v1006
        %v1008 = vpop.f32.mrb[0].mxu0
        %1009 = vdwg.mxu0
        %1012 = vrot.lane.b32.xlu0 %v1002, 96
        %v1013 = vpop.permute.xlu0 %1012
        %1014 = vrot.lane.b32.xlu0 %v1007, 96
        %v1015 = vpop.permute.xlu0 %1014
        %v1018 = vadd.f32 %v933, %v1013
        %v1019 = vadd.f32 %v934, %v1015
        %vm1020 = vcmask 261120
        %v1021 = vsel %vm1020, %v461, %v648
        %v1022 = vsel %vm1020, %v462, %v649
        %vm1023 = vcmask 523264
        %v1024 = vsel %vm1023, %v1021, %v833
        %v1025 = vsel %vm1023, %v1022, %v834
        %vm1026 = vcmask 785408
        %v1027 = vsel %vm1026, %v1024, %v1018
        %v1028 = vsel %vm1026, %v1025, %v1019
        %v1029 = vmul.f32 %v1027, 0.33333334
        %v1030 = vmul.f32 %v1028, 0.33333334
        %1031 = vst [vmem:[%s290] sm:$0xff] %v1029
        %1032 = vst [vmem:[%s297] sm:$0xff] %v1030
        %s1033 = sand.u32 %s114, 1
        %s1034 = scalar_lea.sflag [#allocation4], %s1033
        %s1035 = sand.u32 %s114, 1
        %s1036 = smul.addr %s1035, 8
        %s1037 = scalar_lea.vmem [#allocation8], %s1036
        %s1038 = sand.u32 %s140, 1
        %s1039 = scalar_lea.sflag [#allocation10], %s1038
        %s1040 = sand.u32 %s140, 1
        %s1041 = smul.addr %s1040, 8
        %s1042 = scalar_lea.vmem [#allocation9], %s1041
        // Predicated region
        $region45: #{tpu_custom_call.1} parent=31 // pred_check
          %p1043 = pneg %p124
        $region46: #{tpu_custom_call.1} parent=31 // pred_check_branch
          %1045 = sbr.rel (%p1043) target = $region48
        $region47: #{tpu_custom_call.1} parent=31 // pred_region
          %s1047 = ssub.s32 128, 128
          %1048 = vsyncadd %s1034, %s1047
          %s1049 = smul.addr %s28, 128
          %s1050 = scalar_lea.hbm %s3, %s1049
          %s1052 = sshll.u32 %s1037, 4
          %s1053 = int_to_ptr.vmem [resolvable:$true] %s1052
          %1055 = dma.vmem_to_hbm [thread:$0]  %s1053, 128, %s1050, %s1034
        $region48: #{tpu_custom_call.1} parent=31 // pred_fallthru
          _
        // Predicated region
        $region49: #{tpu_custom_call.1} parent=31 // pred_check
          %p1056 = pneg %p150
        $region50: #{tpu_custom_call.1} parent=31 // pred_check_branch
          %1058 = sbr.rel (%p1056) target = $region52
        $region51: #{tpu_custom_call.1} parent=31 // pred_region
          %s1060 = ssub.s32 128, 128
          %1061 = vsyncadd %s1039, %s1060
          %s1062 = smul.addr %s28, 128
          %s1063 = scalar_lea.hbm %s4, %s1062
          %s1065 = sshll.u32 %s1042, 4
          %s1066 = int_to_ptr.vmem [resolvable:$true] %s1065
          %1068 = dma.vmem_to_hbm [thread:$0]  %s1066, 128, %s1063, %s1039
        $region52: #{tpu_custom_call.1} parent=31 // pred_fallthru
          _
      $region32: #{tpu_custom_call.1} parent=5 // pred_fallthru
        _
      %p1069 = scmp.le.s32.totalorder 2, %s23
      // Predicated region
      $region53: #{tpu_custom_call.1} parent=5 // pred_check
        %p1070 = pneg %p1069
      $region54: #{tpu_custom_call.1} parent=5 // pred_check_branch
        %1072 = sbr.rel (%p1070) target = $region56
      $region55: #{tpu_custom_call.1} parent=5 // pred_region
        %s1073 = ssub.s32 %s23, 2
        // Predicated region
        $region57: #{tpu_custom_call.1} parent=55 // pred_check
          %p1074 = pneg %p130
        $region58: #{tpu_custom_call.1} parent=55 // pred_check_branch
          %1076 = sbr.rel (%p1074) target = $region60
        $region59: #{tpu_custom_call.1} parent=55 // pred_region
          %s1077 = sand.u32 %s115, 1
          %s1078 = scalar_lea.sflag [#allocation4], %s1077
          %s1079 = sand.u32 %s115, 1
          %s1080 = smul.addr %s1079, 8
          %s1081 = scalar_lea.vmem [#allocation8], %s1080
          %1082 = dma.done %s1078, 128
        $region60: #{tpu_custom_call.1} parent=55 // pred_fallthru
          _
        // Predicated region
        $region61: #{tpu_custom_call.1} parent=55 // pred_check
          %p1083 = pneg %p156
        $region62: #{tpu_custom_call.1} parent=55 // pred_check_branch
          %1085 = sbr.rel (%p1083) target = $region64
        $region63: #{tpu_custom_call.1} parent=55 // pred_region
          %s1086 = sand.u32 %s141, 1
          %s1087 = scalar_lea.sflag [#allocation10], %s1086
          %s1088 = sand.u32 %s141, 1
          %s1089 = smul.addr %s1088, 8
          %s1090 = scalar_lea.vmem [#allocation9], %s1089
          %1091 = dma.done %s1087, 128
        $region64: #{tpu_custom_call.1} parent=55 // pred_fallthru
          _
      $region56: #{tpu_custom_call.1} parent=5 // pred_fallthru
        _
    $region6: #{tpu_custom_call.1} parent=1 // loop_footer
      %s27 = sadd.s32 1, %s23
    $region7: #{tpu_custom_call.1} parent=1 // loop_footer_branch
      %22 = sbr.rel target = $region3
    $region8: #{tpu_custom_call.1} parent=1 // loop_exit
      _
    %1092 = vsyncpa [#allocation3], 1
    %s1093 = scalar_lea.sflag [#allocation3], 1
    %1094 = vsyncpa %s1093, 1
    %1095 = vsyncpa [#allocation6], 1
    %s1096 = scalar_lea.sflag [#allocation6], 1
    %1097 = vsyncpa %s1096, 1
    %1098 = vsyncpa [#allocation4], 1
    %s1099 = scalar_lea.sflag [#allocation4], 1
    %1100 = vsyncpa %s1099, 1
    %1101 = vsyncpa [#allocation10], 1
    %s1102 = scalar_lea.sflag [#allocation10], 1
    %1103 = vsyncpa %s1102, 1

</llo_original>
